<compile_context>
chip_gen: v5e
topology: v5e:2x2
jax: 0.10.0
libtpu: 0.0.40
codegen_flags: <defaults>
</compile_context>

<pallas_src>
import jax
import jax.numpy as jnp
from jax.experimental import pallas as pl
from jax.experimental.pallas import tpu as pltpu


def _generate_passthrough_kernel(seed_hbm_ref, out_hbm_ref, copy_sem):
    """Identity 'generation': one HBM->HBM DMA, no VMEM staging."""
    cp = pltpu.make_async_copy(seed_hbm_ref, out_hbm_ref, copy_sem)
    cp.start()
    cp.wait()


def base_synthesizer_generate(seed_table: jax.Array) -> jax.Array:
    """Pallas-backed equivalent of BaseSynthesizer.forward(number_of_subjects).

    seed_table: [number_of_subjects, num_features] table standing in for whatever a
    fitted subclass would sample; the base class forwards it through untouched.
    """
    size_bytes = seed_table.size * jnp.dtype(seed_table.dtype).itemsize

    return pl.pallas_call(
        _generate_passthrough_kernel,
        out_shape=jax.ShapeDtypeStruct(seed_table.shape, seed_table.dtype),
        in_specs=[pl.BlockSpec(memory_space=pl.ANY)],   # raw HBM ref, no auto-DMA
        out_specs=pl.BlockSpec(memory_space=pl.ANY),    # raw HBM ref, written by DMA
        scratch_shapes=[pltpu.SemaphoreType.DMA(())],
        cost_estimate=pl.CostEstimate(
            flops=0,
            transcendentals=0,
            bytes_accessed=2 * size_bytes,  # one read + one write of the table
        ),
    )(seed_table)


if __name__ == "__main__":
    key = jax.random.PRNGKey(0)

    # Small, deterministic example: "generate" 16 subjects with 128 features.
    number_of_subjects = 16
    num_features = 128
    seed_table = jax.random.normal(
        key, (number_of_subjects, num_features), dtype=jnp.float32
    )
    out = jax.block_until_ready(base_synthesizer_generate(seed_table))
    expected = jax.random.normal(
        key, (number_of_subjects, num_features), dtype=jnp.float32
    )
    assert out.shape == (number_of_subjects, num_features)
    assert bool(jnp.allclose(out, expected)), "pass-through mismatch"

    # Ragged case: non-multiple-of-128 features and non-multiple-of-8 rows.
    # The grid-less HBM->HBM DMA has no (8,128) constraint, so no padding needed.
    k2 = jax.random.PRNGKey(1)
    ragged = jax.random.normal(k2, (13, 96), dtype=jnp.float32)
    out2 = jax.block_until_ready(base_synthesizer_generate(ragged))
    expected2 = jax.random.normal(k2, (13, 96), dtype=jnp.float32)
    assert out2.shape == (13, 96)
    assert bool(jnp.allclose(out2, expected2)), "ragged pass-through mismatch"

    print("KERNEL_OK")
</pallas_src>

<mosaic_0001>
module attributes {stable_mosaic.version = 11 : i64} {
  func.func @_generate_passthrough_kernel(%arg0: memref<16x128xf32, #tpu.memory_space<any>>, %arg1: memref<16x128xf32, #tpu.memory_space<any>>, %arg2: memref<!tpu.dma_semaphore, #tpu.memory_space<semaphore_mem>>) attributes {dimension_semantics = [], scalar_prefetch = 0 : i64, scratch_operands = 1 : i64, tpu.core_type = #tpu.core_type<tc>} {
    tpu.enqueue_dma source(%arg0 : memref<16x128xf32, #tpu.memory_space<any>>) target(%arg1 : memref<16x128xf32, #tpu.memory_space<any>>) target_semaphore(%arg2 : memref<!tpu.dma_semaphore, #tpu.memory_space<semaphore_mem>>)
    tpu.wait_dma2 semaphore(%arg2 : memref<!tpu.dma_semaphore, #tpu.memory_space<semaphore_mem>>) src(%arg0 : memref<16x128xf32, #tpu.memory_space<any>>) dst(%arg1 : memref<16x128xf32, #tpu.memory_space<any>>)
    return
  }
}

</mosaic_0001>

<llo_original>
// kernel: tpu_custom_call.1
$region0: #{tpu_custom_call.1}
  #allocation0 [shape = 'u32[]', space=smem, size = 0x4, offset = 0x4, fixed_abs, tag = 'smem constant byte address 0x4 - core index']
  #allocation1 [shape = 'u32[72,128]{1,0:T(1,128)}', space=vmem, size = 0x9000, scoped, tag = 'internal scratch']
  #allocation2 [shape = 's32[1]{0}', space=sflag, size = 0x4, scoped, tag = 'scratch operand']
  #allocation3 [shape = 's32[]', space=sflag, size = 0x4, offset = 0, fixed_abs, tag = 'sflag constant byte address 0x0 - dummy sync flag']
  #allocation4 [shape = 'u32[0]{0}', space=smem, size = 0, offset = 0, fixed_abs, tag = 'smem constant byte address 0x0 - null']
  %s0 = inlined_call_operand.hbm [shape: f32[16,128], index: 0, kind: input, shape index: {}]
  %s1 = inlined_call_operand.hbm [shape: f32[16,128], index: 1, kind: output, shape index: {}]
  %s2 = sld [smem:[#allocation0]]
  $region2: #{tpu_custom_call.1} parent=0
    _
  %s4 = ssub.s32 1, %s2
  %s5 = scalar_select 0, %s4, %s2
  %s7 = sshll.u32 1, 14
  %s8 = sxor.u32 4294967295, %s7
  %s10 = sshll.u32 %s0, 4
  %s11 = int_to_ptr.hbm [resolvable:$true] %s10
  %s12 = sshll.u32 %s1, 4
  %s13 = int_to_ptr.hbm [resolvable:$true] %s12
  %16 = dma.general %s11, 256, %s13, [#allocation2], [#allocation3], [#allocation4], 0, 0
  %s17 = smul.u32 16, 1
  %s18 = sshll.u32 %s17, 4
  %19 = dma.done [#allocation2], %s18
  %20 = vsyncmov [#allocation2]
  %s21 = vpop.sfrf %20
  %p22 = scmp.eq.s32.totalorder %s21, 0
  %p23 = pneg %p22
  %25 = shalt.err (%p23)

</llo_original>
